<compile_context>
chip_gen: v7x
topology: tpu7x:2x2x1
jax: 0.10.0
libtpu: 0.0.40
codegen_flags: <defaults>
</compile_context>

<pallas_src>
import functools

import jax
import jax.numpy as jnp
from jax.experimental import pallas as pl
from jax.experimental.pallas import tpu as pltpu

FES = 3            # forward_embedding_size
IN_DIM = 28 * 28   # 784
H1, H2, OUT = 128, 64, 10
OUT_PAD = 128      # lane-dense padded output width of the last Linear
NEG_SLOPE = 0.01   # nn.LeakyReLU() default


# ------------------------------ kernels ---------------------------------

def _leaky_relu(v):
    return jnp.where(v >= 0.0, v, NEG_SLOPE * v)


def _linear(a, wx_ref, b_ref, n=None, wn_ref=None):
    """cat([a, n], 1) @ W.T + b  ==  a @ Wx + (n @ Wn) + b.

    The noise term (contraction dim = FES = 3) is done as FES broadcast
    multiply-adds on the VPU instead of an MXU dot.
    """
    acc = jnp.dot(a.astype(wx_ref.dtype), wx_ref[...],
                  preferred_element_type=jnp.float32)
    acc = acc + b_ref[...].astype(jnp.float32)
    if n is not None:
        nf = n.astype(jnp.float32)
        wn = wn_ref[...].astype(jnp.float32)
        for f in range(FES):                      # static, FES == 3
            acc = acc + nf[:, f:f + 1] * wn[f:f + 1, :]
    return acc


def _kernel_noisy(x_ref, n0_ref, n1_ref, n2_ref,
                  w1x_ref, w1n_ref, b1_ref,
                  w2x_ref, w2n_ref, b2_ref,
                  w3x_ref, w3n_ref, b3_ref,
                  o_ref):
    h = _leaky_relu(_linear(x_ref[...], w1x_ref, b1_ref, n0_ref[...], w1n_ref))
    h = _leaky_relu(_linear(h, w2x_ref, b2_ref, n1_ref[...], w2n_ref))
    o_ref[...] = _linear(h, w3x_ref, b3_ref, n2_ref[...], w3n_ref).astype(o_ref.dtype)


def _kernel_zero_noise(x_ref,
                       w1x_ref, b1_ref,
                       w2x_ref, b2_ref,
                       w3x_ref, b3_ref,
                       o_ref):
    # layer_noise=None: noise is all-zeros, so the noise term vanishes and we
    # skip the noise inputs / weights entirely.
    h = _leaky_relu(_linear(x_ref[...], w1x_ref, b1_ref))
    h = _leaky_relu(_linear(h, w2x_ref, b2_ref))
    o_ref[...] = _linear(h, w3x_ref, b3_ref).astype(o_ref.dtype)


# ---------------------------- pallas_call -------------------------------

def _round_up(n, m):
    return -(-n // m) * m


def _tile_rows(b):
    # 512-row tiles (MXU-M friendly on v6e/v7x, multiple of 128 for v5e) at
    # large batch; a single sublane-aligned tile at small batch.  512 f32 rows
    # keeps the double-buffered x stream well under the 16 MiB (v5e) scoped
    # VMEM default.
    if b >= 512:
        return 512
    return _round_up(max(b, 1), 8)


def _noise_mlp_call(params, x, noises):
    """noises is a 3-tuple of (B, FES) arrays, or None for the zero-noise path."""
    b = x.shape[0]
    bt = _tile_rows(b)
    b_pad = _round_up(b, bt)
    if b_pad != b:
        pad = ((0, b_pad - b), (0, 0))
        x = jnp.pad(x, pad)
        if noises is not None:
            noises = tuple(jnp.pad(n, pad) for n in noises)
    grid = (b_pad // bt,)

    def row_spec(cols):                       # batch-tiled stream
        return pl.BlockSpec((bt, cols), lambda i: (i, 0))

    def const_spec(a):                        # VMEM-resident across batch steps
        return pl.BlockSpec(a.shape, lambda i: (0, 0))

    if noises is not None:
        kernel = _kernel_noisy
        args = (x, noises[0], noises[1], noises[2],
                params['w1x'], params['w1n'], params['b1'],
                params['w2x'], params['w2n'], params['b2'],
                params['w3x'], params['w3n'], params['b3'])
        in_specs = ([row_spec(IN_DIM), row_spec(FES), row_spec(FES), row_spec(FES)]
                    + [const_spec(a) for a in args[4:]])
    else:
        kernel = _kernel_zero_noise
        args = (x,
                params['w1x'], params['b1'],
                params['w2x'], params['b2'],
                params['w3x'], params['b3'])
        in_specs = [row_spec(IN_DIM)] + [const_spec(a) for a in args[1:]]

    out = pl.pallas_call(
        kernel,
        out_shape=jax.ShapeDtypeStruct((b_pad, OUT_PAD), jnp.float32),
        grid=grid,
        in_specs=in_specs,
        out_specs=pl.BlockSpec((bt, OUT_PAD), lambda i: (i, 0)),
        compiler_params=pltpu.CompilerParams(
            dimension_semantics=("parallel",)),   # batch tiles independent -> megacore
    )(*args)
    return out[:b, :OUT]


# ------------------------------ forward ---------------------------------

@jax.jit
def _forward_noisy(params, x, n0, n1, n2):
    return _noise_mlp_call(params, x, (n0, n1, n2))


@jax.jit
def _forward_zero_noise(params, x):
    return _noise_mlp_call(params, x, None)


def noise_linear_forward(params, x, layer_noise=None):
    x = jnp.asarray(x, jnp.float32)
    if layer_noise is None:
        return _forward_zero_noise(params, x)
    n0, n1, n2 = (jnp.asarray(layer_noise[i], jnp.float32) for i in range(3))
    return _forward_noisy(params, x, n0, n1, n2)


# ------------------------- parameter construction -----------------------

def init_params(key, dtype=jnp.float32):
    """nn.Linear-style init; weights stored pre-transposed [in, out] and pre-split
    into activation / noise parts; last layer zero-padded to OUT_PAD lanes."""
    ks = jax.random.split(key, 6)

    def u(k, shape, fan_in):
        bound = 1.0 / float(fan_in) ** 0.5
        return jax.random.uniform(k, shape, jnp.float32, -bound, bound)

    def linear(kw, kb, in_f, out_f, out_pad=None):
        w = u(kw, (out_f, in_f), in_f).T           # [in_f, out_f]
        bias = u(kb, (1, out_f), in_f)             # [1,  out_f]
        if out_pad is not None and out_pad != out_f:
            w = jnp.pad(w, ((0, 0), (0, out_pad - out_f)))
            bias = jnp.pad(bias, ((0, 0), (0, out_pad - out_f)))
        wx, wn = w[:in_f - FES, :], w[in_f - FES:, :]
        return wx.astype(dtype), wn.astype(dtype), bias.astype(dtype)

    p = {}
    p['w1x'], p['w1n'], p['b1'] = linear(ks[0], ks[1], IN_DIM + FES, H1)
    p['w2x'], p['w2n'], p['b2'] = linear(ks[2], ks[3], H1 + FES, H2)
    p['w3x'], p['w3n'], p['b3'] = linear(ks[4], ks[5], H2 + FES, OUT, out_pad=OUT_PAD)
    return p


# ----------------------------- reference --------------------------------

def _reference(params, x, n0, n1, n2):
    hp = jax.lax.Precision.HIGHEST

    def lin(a, n, wx, wn, b):
        return (jnp.dot(a, wx.astype(jnp.float32), precision=hp)
                + jnp.dot(n, wn.astype(jnp.float32), precision=hp)
                + b.astype(jnp.float32))

    h = _leaky_relu(lin(x, n0, params['w1x'], params['w1n'], params['b1']))
    h = _leaky_relu(lin(h, n1, params['w2x'], params['w2n'], params['b2']))
    return lin(h, n2, params['w3x'], params['w3n'], params['b3'])[:, :OUT]


if __name__ == "__main__":
    key = jax.random.PRNGKey(0)
    pkey, xkey, k0, k1, k2 = jax.random.split(key, 5)
    params = init_params(pkey)            # f32: exact PyTorch Linear numerics

    B = 2
    x = jax.random.normal(xkey, (B, IN_DIM), jnp.float32)
    layer_noise = (
        jax.random.normal(k0, (B, FES), jnp.float32),
        jax.random.normal(k1, (B, FES), jnp.float32),
        jax.random.normal(k2, (B, FES), jnp.float32),
    )

    # Noisy path.
    out = jax.block_until_ready(noise_linear_forward(params, x, layer_noise))
    assert out.shape == (B, OUT) and out.dtype == jnp.float32
    ref = _reference(params, x, *layer_noise)
    assert float(jnp.max(jnp.abs(out - ref))) < 1e-2

    # Default path (layer_noise=None -> zero noise, reduces to plain MLP).
    out_default = jax.block_until_ready(noise_linear_forward(params, x, None))
    assert out_default.shape == (B, OUT)
    z = jnp.zeros((B, FES), jnp.float32)
    ref_default = _reference(params, x, z, z, z)
    assert float(jnp.max(jnp.abs(out_default - ref_default))) < 1e-2

    print("KERNEL_OK")
</pallas_src>

<mosaic_0001>
module attributes {stable_mosaic.version = 11 : i64} {
  func.func @_kernel_noisy(%arg0: i32, %arg1: memref<8x784xf32, #tpu.memory_space<vmem>>, %arg2: memref<8x3xf32, #tpu.memory_space<vmem>>, %arg3: memref<8x3xf32, #tpu.memory_space<vmem>>, %arg4: memref<8x3xf32, #tpu.memory_space<vmem>>, %arg5: memref<784x128xf32, #tpu.memory_space<vmem>>, %arg6: memref<3x128xf32, #tpu.memory_space<vmem>>, %arg7: memref<1x128xf32, #tpu.memory_space<vmem>>, %arg8: memref<128x64xf32, #tpu.memory_space<vmem>>, %arg9: memref<3x64xf32, #tpu.memory_space<vmem>>, %arg10: memref<1x64xf32, #tpu.memory_space<vmem>>, %arg11: memref<64x128xf32, #tpu.memory_space<vmem>>, %arg12: memref<3x128xf32, #tpu.memory_space<vmem>>, %arg13: memref<1x128xf32, #tpu.memory_space<vmem>>, %arg14: memref<8x128xf32, #tpu.memory_space<vmem>>) attributes {dimension_semantics = [#tpu.dimension_semantics<parallel>], iteration_bounds = array<i64: 1>, scalar_prefetch = 0 : i64, scratch_operands = 0 : i64, tpu.core_type = #tpu.core_type<tc>, window_params = [{transform_indices = @transform_0, window_bounds = array<i64: 8, 784>}, {transform_indices = @transform_1, window_bounds = array<i64: 8, 3>}, {transform_indices = @transform_2, window_bounds = array<i64: 8, 3>}, {transform_indices = @transform_3, window_bounds = array<i64: 8, 3>}, {pipeline_mode = #tpu.pipeline_mode<synchronous>, transform_indices = @transform_4, window_bounds = array<i64: 784, 128>}, {pipeline_mode = #tpu.pipeline_mode<synchronous>, transform_indices = @transform_5, window_bounds = array<i64: 3, 128>}, {pipeline_mode = #tpu.pipeline_mode<synchronous>, transform_indices = @transform_6, window_bounds = array<i64: 1, 128>}, {pipeline_mode = #tpu.pipeline_mode<synchronous>, transform_indices = @transform_7, window_bounds = array<i64: 128, 64>}, {pipeline_mode = #tpu.pipeline_mode<synchronous>, transform_indices = @transform_8, window_bounds = array<i64: 3, 64>}, {pipeline_mode = #tpu.pipeline_mode<synchronous>, transform_indices = @transform_9, window_bounds = array<i64: 1, 64>}, {pipeline_mode = #tpu.pipeline_mode<synchronous>, transform_indices = @transform_10, window_bounds = array<i64: 64, 128>}, {pipeline_mode = #tpu.pipeline_mode<synchronous>, transform_indices = @transform_11, window_bounds = array<i64: 3, 128>}, {pipeline_mode = #tpu.pipeline_mode<synchronous>, transform_indices = @transform_12, window_bounds = array<i64: 1, 128>}, {transform_indices = @transform_13, window_bounds = array<i64: 8, 128>}]} {
    %c0 = arith.constant 0 : index
    %c0_0 = arith.constant 0 : index
    %0 = vector.load %arg1[%c0, %c0_0] : memref<8x784xf32, #tpu.memory_space<vmem>>, vector<8x784xf32>
    %c0_1 = arith.constant 0 : index
    %c0_2 = arith.constant 0 : index
    %1 = vector.load %arg2[%c0_1, %c0_2] : memref<8x3xf32, #tpu.memory_space<vmem>>, vector<8x3xf32>
    %c0_3 = arith.constant 0 : index
    %c0_4 = arith.constant 0 : index
    %2 = vector.load %arg5[%c0_3, %c0_4] : memref<784x128xf32, #tpu.memory_space<vmem>>, vector<784x128xf32>
    %cst = arith.constant dense<0.000000e+00> : vector<8x128xf32>
    %3 = tpu.matmul %0, %2, %cst {dimension_numbers = #tpu.dot_dimension_numbers<[1], [0], [0], [1], [0, 0, 1, 1], [], []>} : vector<8x784xf32>, vector<784x128xf32>, vector<8x128xf32> -> vector<8x128xf32>
    %c0_5 = arith.constant 0 : index
    %c0_6 = arith.constant 0 : index
    %4 = vector.load %arg7[%c0_5, %c0_6] : memref<1x128xf32, #tpu.memory_space<vmem>>, vector<1x128xf32>
    %5 = vector.broadcast %4 : vector<1x128xf32> to vector<8x128xf32>
    %6 = arith.addf %3, %5 : vector<8x128xf32>
    %c0_7 = arith.constant 0 : index
    %c0_8 = arith.constant 0 : index
    %7 = vector.load %arg6[%c0_7, %c0_8] : memref<3x128xf32, #tpu.memory_space<vmem>>, vector<3x128xf32>
    %8 = vector.extract_strided_slice %1 {offsets = [0, 0], sizes = [8, 1], strides = [1, 1]} : vector<8x3xf32> to vector<8x1xf32>
    %9 = vector.extract_strided_slice %7 {offsets = [0, 0], sizes = [1, 128], strides = [1, 1]} : vector<3x128xf32> to vector<1x128xf32>
    %10 = vector.broadcast %8 : vector<8x1xf32> to vector<8x128xf32>
    %11 = vector.broadcast %9 : vector<1x128xf32> to vector<8x128xf32>
    %12 = arith.mulf %10, %11 : vector<8x128xf32>
    %13 = arith.addf %6, %12 : vector<8x128xf32>
    %14 = vector.extract_strided_slice %1 {offsets = [0, 1], sizes = [8, 1], strides = [1, 1]} : vector<8x3xf32> to vector<8x1xf32>
    %15 = vector.extract_strided_slice %7 {offsets = [1, 0], sizes = [1, 128], strides = [1, 1]} : vector<3x128xf32> to vector<1x128xf32>
    %16 = vector.broadcast %14 : vector<8x1xf32> to vector<8x128xf32>
    %17 = vector.broadcast %15 : vector<1x128xf32> to vector<8x128xf32>
    %18 = arith.mulf %16, %17 : vector<8x128xf32>
    %19 = arith.addf %13, %18 : vector<8x128xf32>
    %20 = vector.extract_strided_slice %1 {offsets = [0, 2], sizes = [8, 1], strides = [1, 1]} : vector<8x3xf32> to vector<8x1xf32>
    %21 = vector.extract_strided_slice %7 {offsets = [2, 0], sizes = [1, 128], strides = [1, 1]} : vector<3x128xf32> to vector<1x128xf32>
    %22 = vector.broadcast %20 : vector<8x1xf32> to vector<8x128xf32>
    %23 = vector.broadcast %21 : vector<1x128xf32> to vector<8x128xf32>
    %24 = arith.mulf %22, %23 : vector<8x128xf32>
    %25 = arith.addf %19, %24 : vector<8x128xf32>
    %cst_9 = arith.constant 0.000000e+00 : f32
    %26 = vector.broadcast %cst_9 : f32 to vector<8x128xf32>
    %27 = arith.cmpf oge, %25, %26 : vector<8x128xf32>
    %cst_10 = arith.constant 0.00999999977 : f32
    %28 = vector.broadcast %cst_10 : f32 to vector<8x128xf32>
    %29 = arith.mulf %28, %25 : vector<8x128xf32>
    %30 = arith.select %27, %25, %29 : vector<8x128xi1>, vector<8x128xf32>
    %c0_11 = arith.constant 0 : index
    %c0_12 = arith.constant 0 : index
    %31 = vector.load %arg3[%c0_11, %c0_12] : memref<8x3xf32, #tpu.memory_space<vmem>>, vector<8x3xf32>
    %c0_13 = arith.constant 0 : index
    %c0_14 = arith.constant 0 : index
    %32 = vector.load %arg8[%c0_13, %c0_14] : memref<128x64xf32, #tpu.memory_space<vmem>>, vector<128x64xf32>
    %cst_15 = arith.constant dense<0.000000e+00> : vector<8x64xf32>
    %33 = tpu.matmul %30, %32, %cst_15 {dimension_numbers = #tpu.dot_dimension_numbers<[1], [0], [0], [1], [0, 0, 1, 1], [], []>} : vector<8x128xf32>, vector<128x64xf32>, vector<8x64xf32> -> vector<8x64xf32>
    %c0_16 = arith.constant 0 : index
    %c0_17 = arith.constant 0 : index
    %34 = vector.load %arg10[%c0_16, %c0_17] : memref<1x64xf32, #tpu.memory_space<vmem>>, vector<1x64xf32>
    %35 = vector.broadcast %34 : vector<1x64xf32> to vector<8x64xf32>
    %36 = arith.addf %33, %35 : vector<8x64xf32>
    %c0_18 = arith.constant 0 : index
    %c0_19 = arith.constant 0 : index
    %37 = vector.load %arg9[%c0_18, %c0_19] : memref<3x64xf32, #tpu.memory_space<vmem>>, vector<3x64xf32>
    %38 = vector.extract_strided_slice %31 {offsets = [0, 0], sizes = [8, 1], strides = [1, 1]} : vector<8x3xf32> to vector<8x1xf32>
    %39 = vector.extract_strided_slice %37 {offsets = [0, 0], sizes = [1, 64], strides = [1, 1]} : vector<3x64xf32> to vector<1x64xf32>
    %40 = vector.broadcast %38 : vector<8x1xf32> to vector<8x64xf32>
    %41 = vector.broadcast %39 : vector<1x64xf32> to vector<8x64xf32>
    %42 = arith.mulf %40, %41 : vector<8x64xf32>
    %43 = arith.addf %36, %42 : vector<8x64xf32>
    %44 = vector.extract_strided_slice %31 {offsets = [0, 1], sizes = [8, 1], strides = [1, 1]} : vector<8x3xf32> to vector<8x1xf32>
    %45 = vector.extract_strided_slice %37 {offsets = [1, 0], sizes = [1, 64], strides = [1, 1]} : vector<3x64xf32> to vector<1x64xf32>
    %46 = vector.broadcast %44 : vector<8x1xf32> to vector<8x64xf32>
    %47 = vector.broadcast %45 : vector<1x64xf32> to vector<8x64xf32>
    %48 = arith.mulf %46, %47 : vector<8x64xf32>
    %49 = arith.addf %43, %48 : vector<8x64xf32>
    %50 = vector.extract_strided_slice %31 {offsets = [0, 2], sizes = [8, 1], strides = [1, 1]} : vector<8x3xf32> to vector<8x1xf32>
    %51 = vector.extract_strided_slice %37 {offsets = [2, 0], sizes = [1, 64], strides = [1, 1]} : vector<3x64xf32> to vector<1x64xf32>
    %52 = vector.broadcast %50 : vector<8x1xf32> to vector<8x64xf32>
    %53 = vector.broadcast %51 : vector<1x64xf32> to vector<8x64xf32>
    %54 = arith.mulf %52, %53 : vector<8x64xf32>
    %55 = arith.addf %49, %54 : vector<8x64xf32>
    %cst_20 = arith.constant 0.000000e+00 : f32
    %56 = vector.broadcast %cst_20 : f32 to vector<8x64xf32>
    %57 = arith.cmpf oge, %55, %56 : vector<8x64xf32>
    %cst_21 = arith.constant 0.00999999977 : f32
    %58 = vector.broadcast %cst_21 : f32 to vector<8x64xf32>
    %59 = arith.mulf %58, %55 : vector<8x64xf32>
    %60 = arith.select %57, %55, %59 : vector<8x64xi1>, vector<8x64xf32>
    %c0_22 = arith.constant 0 : index
    %c0_23 = arith.constant 0 : index
    %61 = vector.load %arg4[%c0_22, %c0_23] : memref<8x3xf32, #tpu.memory_space<vmem>>, vector<8x3xf32>
    %c0_24 = arith.constant 0 : index
    %c0_25 = arith.constant 0 : index
    %62 = vector.load %arg11[%c0_24, %c0_25] : memref<64x128xf32, #tpu.memory_space<vmem>>, vector<64x128xf32>
    %cst_26 = arith.constant dense<0.000000e+00> : vector<8x128xf32>
    %63 = tpu.matmul %60, %62, %cst_26 {dimension_numbers = #tpu.dot_dimension_numbers<[1], [0], [0], [1], [0, 0, 1, 1], [], []>} : vector<8x64xf32>, vector<64x128xf32>, vector<8x128xf32> -> vector<8x128xf32>
    %c0_27 = arith.constant 0 : index
    %c0_28 = arith.constant 0 : index
    %64 = vector.load %arg13[%c0_27, %c0_28] : memref<1x128xf32, #tpu.memory_space<vmem>>, vector<1x128xf32>
    %65 = vector.broadcast %64 : vector<1x128xf32> to vector<8x128xf32>
    %66 = arith.addf %63, %65 : vector<8x128xf32>
    %c0_29 = arith.constant 0 : index
    %c0_30 = arith.constant 0 : index
    %67 = vector.load %arg12[%c0_29, %c0_30] : memref<3x128xf32, #tpu.memory_space<vmem>>, vector<3x128xf32>
    %68 = vector.extract_strided_slice %61 {offsets = [0, 0], sizes = [8, 1], strides = [1, 1]} : vector<8x3xf32> to vector<8x1xf32>
    %69 = vector.extract_strided_slice %67 {offsets = [0, 0], sizes = [1, 128], strides = [1, 1]} : vector<3x128xf32> to vector<1x128xf32>
    %70 = vector.broadcast %68 : vector<8x1xf32> to vector<8x128xf32>
    %71 = vector.broadcast %69 : vector<1x128xf32> to vector<8x128xf32>
    %72 = arith.mulf %70, %71 : vector<8x128xf32>
    %73 = arith.addf %66, %72 : vector<8x128xf32>
    %74 = vector.extract_strided_slice %61 {offsets = [0, 1], sizes = [8, 1], strides = [1, 1]} : vector<8x3xf32> to vector<8x1xf32>
    %75 = vector.extract_strided_slice %67 {offsets = [1, 0], sizes = [1, 128], strides = [1, 1]} : vector<3x128xf32> to vector<1x128xf32>
    %76 = vector.broadcast %74 : vector<8x1xf32> to vector<8x128xf32>
    %77 = vector.broadcast %75 : vector<1x128xf32> to vector<8x128xf32>
    %78 = arith.mulf %76, %77 : vector<8x128xf32>
    %79 = arith.addf %73, %78 : vector<8x128xf32>
    %80 = vector.extract_strided_slice %61 {offsets = [0, 2], sizes = [8, 1], strides = [1, 1]} : vector<8x3xf32> to vector<8x1xf32>
    %81 = vector.extract_strided_slice %67 {offsets = [2, 0], sizes = [1, 128], strides = [1, 1]} : vector<3x128xf32> to vector<1x128xf32>
    %82 = vector.broadcast %80 : vector<8x1xf32> to vector<8x128xf32>
    %83 = vector.broadcast %81 : vector<1x128xf32> to vector<8x128xf32>
    %84 = arith.mulf %82, %83 : vector<8x128xf32>
    %85 = arith.addf %79, %84 : vector<8x128xf32>
    %c0_31 = arith.constant 0 : index
    %c0_32 = arith.constant 0 : index
    %86 = vector.load %arg14[%c0_31, %c0_32] : memref<8x128xf32, #tpu.memory_space<vmem>>, vector<8x128xf32>
    tpu.vector_store %arg14[%c0_31, %c0_32], %85 {strides = array<i32>} : memref<8x128xf32, #tpu.memory_space<vmem>>, vector<8x128xf32>,
    return
  }
  func.func @transform_0(%arg0: i32) -> (i32, i32) {
    %c0_i32 = arith.constant 0 : i32
    %c0_i32_0 = arith.constant 0 : i32
    return %arg0, %c0_i32 : i32, i32
  }
  func.func @transform_1(%arg0: i32) -> (i32, i32) {
    %c0_i32 = arith.constant 0 : i32
    %c0_i32_0 = arith.constant 0 : i32
    return %arg0, %c0_i32 : i32, i32
  }
  func.func @transform_2(%arg0: i32) -> (i32, i32) {
    %c0_i32 = arith.constant 0 : i32
    %c0_i32_0 = arith.constant 0 : i32
    return %arg0, %c0_i32 : i32, i32
  }
  func.func @transform_3(%arg0: i32) -> (i32, i32) {
    %c0_i32 = arith.constant 0 : i32
    %c0_i32_0 = arith.constant 0 : i32
    return %arg0, %c0_i32 : i32, i32
  }
  func.func @transform_4(%arg0: i32) -> (i32, i32) {
    %c0_i32 = arith.constant 0 : i32
    %c0_i32_0 = arith.constant 0 : i32
    %c0_i32_1 = arith.constant 0 : i32
    return %c0_i32, %c0_i32_0 : i32, i32
  }
  func.func @transform_5(%arg0: i32) -> (i32, i32) {
    %c0_i32 = arith.constant 0 : i32
    %c0_i32_0 = arith.constant 0 : i32
    %c0_i32_1 = arith.constant 0 : i32
    return %c0_i32, %c0_i32_0 : i32, i32
  }
  func.func @transform_6(%arg0: i32) -> (i32, i32) {
    %c0_i32 = arith.constant 0 : i32
    %c0_i32_0 = arith.constant 0 : i32
    %c0_i32_1 = arith.constant 0 : i32
    return %c0_i32, %c0_i32_0 : i32, i32
  }
  func.func @transform_7(%arg0: i32) -> (i32, i32) {
    %c0_i32 = arith.constant 0 : i32
    %c0_i32_0 = arith.constant 0 : i32
    %c0_i32_1 = arith.constant 0 : i32
    return %c0_i32, %c0_i32_0 : i32, i32
  }
  func.func @transform_8(%arg0: i32) -> (i32, i32) {
    %c0_i32 = arith.constant 0 : i32
    %c0_i32_0 = arith.constant 0 : i32
    %c0_i32_1 = arith.constant 0 : i32
    return %c0_i32, %c0_i32_0 : i32, i32
  }
  func.func @transform_9(%arg0: i32) -> (i32, i32) {
    %c0_i32 = arith.constant 0 : i32
    %c0_i32_0 = arith.constant 0 : i32
    %c0_i32_1 = arith.constant 0 : i32
    return %c0_i32, %c0_i32_0 : i32, i32
  }
  func.func @transform_10(%arg0: i32) -> (i32, i32) {
    %c0_i32 = arith.constant 0 : i32
    %c0_i32_0 = arith.constant 0 : i32
    %c0_i32_1 = arith.constant 0 : i32
    return %c0_i32, %c0_i32_0 : i32, i32
  }
  func.func @transform_11(%arg0: i32) -> (i32, i32) {
    %c0_i32 = arith.constant 0 : i32
    %c0_i32_0 = arith.constant 0 : i32
    %c0_i32_1 = arith.constant 0 : i32
    return %c0_i32, %c0_i32_0 : i32, i32
  }
  func.func @transform_12(%arg0: i32) -> (i32, i32) {
    %c0_i32 = arith.constant 0 : i32
    %c0_i32_0 = arith.constant 0 : i32
    %c0_i32_1 = arith.constant 0 : i32
    return %c0_i32, %c0_i32_0 : i32, i32
  }
  func.func @transform_13(%arg0: i32) -> (i32, i32) {
    %c0_i32 = arith.constant 0 : i32
    %c0_i32_0 = arith.constant 0 : i32
    return %arg0, %c0_i32 : i32, i32
  }
}

</mosaic_0001>

<llo_original>
// kernel: _forward_noisy.1
$region0: #{_forward_noisy.1}
  #allocation0 [shape = 'u32[]', space=smem, size = 0x4, offset = 0x4, fixed_abs, tag = 'smem constant byte address 0x4 - core index']
  #allocation1 [shape = 'u32[144,128]{1,0:T(1,128)}', space=vmem, size = 0x12000, scoped, tag = 'internal scratch']
  %s0 = inlined_call_operand.vmem [shape: f32[8,784], index: 0, kind: input, shape index: {}]
  %s1 = inlined_call_operand.vmem [shape: f32[8,3], index: 1, kind: input, shape index: {}]
  %s2 = inlined_call_operand.vmem [shape: f32[8,3], index: 2, kind: input, shape index: {}]
  %s3 = inlined_call_operand.vmem [shape: f32[8,3], index: 3, kind: input, shape index: {}]
  %s4 = inlined_call_operand.hbm [shape: f32[784,128], index: 4, kind: input, shape index: {}]
  %s5 = inlined_call_operand.vmem [shape: f32[3,128], index: 5, kind: input, shape index: {}]
  %s6 = inlined_call_operand.vmem [shape: f32[1,128], index: 6, kind: input, shape index: {}]
  %s7 = inlined_call_operand.vmem [shape: f32[128,64], index: 7, kind: input, shape index: {}]
  %s8 = inlined_call_operand.vmem [shape: f32[3,64], index: 8, kind: input, shape index: {}]
  %s9 = inlined_call_operand.vmem [shape: f32[1,64], index: 9, kind: input, shape index: {}]
  %s10 = inlined_call_operand.vmem [shape: f32[64,128], index: 10, kind: input, shape index: {}]
  %s11 = inlined_call_operand.vmem [shape: f32[3,128], index: 11, kind: input, shape index: {}]
  %s12 = inlined_call_operand.vmem [shape: f32[1,128], index: 12, kind: input, shape index: {}]
  %s13 = inlined_call_operand.vmem [shape: f32[8,128], index: 13, kind: output, shape index: {}]
  %s14 = sld [smem:[#allocation0]]
  $region66: #{_forward_noisy.1} parent=0
    _
  %s16 = ssub.s32 1, %s14
  %s17 = scalar_select 0, %s16, %s14
  $region1: #{_forward_noisy.1} parent=0
    #allocation2 [shape = 'u8[401408]{0}', space=vmem, size = 0x62000, scoped, tag = 'input window, operand 4, single buffered']
    #allocation3 [shape = 's32[1]{0}', space=sflag, size = 0x4, scoped, tag = 'scoped memory for _forward_noisy.1']
    %18 = vsyncpa [#allocation3], 0
    // Predicated region
    $region2: #{_forward_noisy.1} parent=1 // pred_check
      _
    $region3: #{_forward_noisy.1} parent=1 // pred_check_branch
      %20 = sbr.rel (0) target = $region5
    $region4: #{_forward_noisy.1} parent=1 // pred_region
      _
    $region5: #{_forward_noisy.1} parent=1 // pred_fallthru
      _
    // Predicated region
    $region6: #{_forward_noisy.1} parent=1 // pred_check
      _
    $region7: #{_forward_noisy.1} parent=1 // pred_check_branch
      %22 = sbr.rel (0) target = $region9
    $region8: #{_forward_noisy.1} parent=1 // pred_region
      _
    $region9: #{_forward_noisy.1} parent=1 // pred_fallthru
      _
    // Predicated region
    $region10: #{_forward_noisy.1} parent=1 // pred_check
      _
    $region11: #{_forward_noisy.1} parent=1 // pred_check_branch
      %24 = sbr.rel (0) target = $region13
    $region12: #{_forward_noisy.1} parent=1 // pred_region
      _
    $region13: #{_forward_noisy.1} parent=1 // pred_fallthru
      _
    // Predicated region
    $region14: #{_forward_noisy.1} parent=1 // pred_check
      _
    $region15: #{_forward_noisy.1} parent=1 // pred_check_branch
      %26 = sbr.rel (0) target = $region17
    $region16: #{_forward_noisy.1} parent=1 // pred_region
      _
    $region17: #{_forward_noisy.1} parent=1 // pred_fallthru
      _
    // Predicated region
    $region18: #{_forward_noisy.1} parent=1 // pred_check
      _
    $region19: #{_forward_noisy.1} parent=1 // pred_check_branch
      %28 = sbr.rel (0) target = $region21
    $region20: #{_forward_noisy.1} parent=1 // pred_region
      %s30 = ssub.s32 12544, 12544
      %31 = vsyncadd [#allocation3], %s30
      %s32 = sshll.u32 [#allocation2], 4
      %s33 = int_to_ptr.vmem [resolvable:$true] %s32
      %38 = dma.hbm_to_vmem [thread:$0]  %s4, 12544, %s33, [#allocation3], 128, 128, 8
    $region21: #{_forward_noisy.1} parent=1 // pred_fallthru
      _
    // Predicated region
    $region22: #{_forward_noisy.1} parent=1 // pred_check
      _
    $region23: #{_forward_noisy.1} parent=1 // pred_check_branch
      %40 = sbr.rel (0) target = $region25
    $region24: #{_forward_noisy.1} parent=1 // pred_region
      _
    $region25: #{_forward_noisy.1} parent=1 // pred_fallthru
      _
    // Predicated region
    $region26: #{_forward_noisy.1} parent=1 // pred_check
      _
    $region27: #{_forward_noisy.1} parent=1 // pred_check_branch
      %42 = sbr.rel (0) target = $region29
    $region28: #{_forward_noisy.1} parent=1 // pred_region
      _
    $region29: #{_forward_noisy.1} parent=1 // pred_fallthru
      _
    // Predicated region
    $region30: #{_forward_noisy.1} parent=1 // pred_check
      _
    $region31: #{_forward_noisy.1} parent=1 // pred_check_branch
      %44 = sbr.rel (0) target = $region33
    $region32: #{_forward_noisy.1} parent=1 // pred_region
      _
    $region33: #{_forward_noisy.1} parent=1 // pred_fallthru
      _
    // Predicated region
    $region34: #{_forward_noisy.1} parent=1 // pred_check
      _
    $region35: #{_forward_noisy.1} parent=1 // pred_check_branch
      %46 = sbr.rel (0) target = $region37
    $region36: #{_forward_noisy.1} parent=1 // pred_region
      _
    $region37: #{_forward_noisy.1} parent=1 // pred_fallthru
      _
    // Predicated region
    $region38: #{_forward_noisy.1} parent=1 // pred_check
      _
    $region39: #{_forward_noisy.1} parent=1 // pred_check_branch
      %48 = sbr.rel (0) target = $region41
    $region40: #{_forward_noisy.1} parent=1 // pred_region
      _
    $region41: #{_forward_noisy.1} parent=1 // pred_fallthru
      _
    // Predicated region
    $region42: #{_forward_noisy.1} parent=1 // pred_check
      _
    $region43: #{_forward_noisy.1} parent=1 // pred_check_branch
      %50 = sbr.rel (0) target = $region45
    $region44: #{_forward_noisy.1} parent=1 // pred_region
      _
    $region45: #{_forward_noisy.1} parent=1 // pred_fallthru
      _
    // Predicated region
    $region46: #{_forward_noisy.1} parent=1 // pred_check
      _
    $region47: #{_forward_noisy.1} parent=1 // pred_check_branch
      %52 = sbr.rel (0) target = $region49
    $region48: #{_forward_noisy.1} parent=1 // pred_region
      _
    $region49: #{_forward_noisy.1} parent=1 // pred_fallthru
      _
    // Predicated region
    $region50: #{_forward_noisy.1} parent=1 // pred_check
      _
    $region51: #{_forward_noisy.1} parent=1 // pred_check_branch
      %54 = sbr.rel (0) target = $region53
    $region52: #{_forward_noisy.1} parent=1 // pred_region
      _
    $region53: #{_forward_noisy.1} parent=1 // pred_fallthru
      _
    // Predicated region
    $region54: #{_forward_noisy.1} parent=1 // pred_check
      _
    $region55: #{_forward_noisy.1} parent=1 // pred_check_branch
      %56 = sbr.rel (0) target = $region57
    $region56: #{_forward_noisy.1} parent=1 // pred_region
      %57 = dma.done [#allocation3], 12544
    $region57: #{_forward_noisy.1} parent=1 // pred_fallthru
      _
    %v58 = vld [vmem:[%s0] sm:$0xff]
    %v59 = vld [vmem:[%s0 + $0x8] sm:$0xff]
    %v60 = vld [vmem:[%s0 + $0x10] sm:$0xff]
    %v61 = vld [vmem:[%s0 + $0x18] sm:$0xff]
    %v62 = vld [vmem:[%s0 + $0x20] sm:$0xff]
    %v63 = vld [vmem:[%s0 + $0x28] sm:$0xff]
    %v64 = vld [vmem:[%s0 + $0x30] sm:$0xff]
    %v65 = vld [vmem:[%s1] sm:$0xff]
    %v66 = vld [vmem:[#allocation2] sm:$0xff]
    %v67 = vld [vmem:[#allocation2 + $0x8] sm:$0xff]
    %v68 = vld [vmem:[#allocation2 + $0x10] sm:$0xff]
    %v69 = vld [vmem:[#allocation2 + $0x18] sm:$0xff]
    %v70 = vld [vmem:[#allocation2 + $0x20] sm:$0xff]
    %v71 = vld [vmem:[#allocation2 + $0x28] sm:$0xff]
    %v72 = vld [vmem:[#allocation2 + $0x30] sm:$0xff]
    %v73 = vld [vmem:[#allocation2 + $0x38] sm:$0xff]
    %v74 = vld [vmem:[#allocation2 + $0x40] sm:$0xff]
    %v75 = vld [vmem:[#allocation2 + $0x48] sm:$0xff]
    %v76 = vld [vmem:[#allocation2 + $0x50] sm:$0xff]
    %v77 = vld [vmem:[#allocation2 + $0x58] sm:$0xff]
    %v78 = vld [vmem:[#allocation2 + $0x60] sm:$0xff]
    %v79 = vld [vmem:[#allocation2 + $0x68] sm:$0xff]
    %v80 = vld [vmem:[#allocation2 + $0x70] sm:$0xff]
    %v81 = vld [vmem:[#allocation2 + $0x78] sm:$0xff]
    %v82 = vld [vmem:[#allocation2 + $0x80] sm:$0xff]
    %v83 = vld [vmem:[#allocation2 + $0x88] sm:$0xff]
    %v84 = vld [vmem:[#allocation2 + $0x90] sm:$0xff]
    %v85 = vld [vmem:[#allocation2 + $0x98] sm:$0xff]
    %v86 = vld [vmem:[#allocation2 + $0xa0] sm:$0xff]
    %v87 = vld [vmem:[#allocation2 + $0xa8] sm:$0xff]
    %v88 = vld [vmem:[#allocation2 + $0xb0] sm:$0xff]
    %v89 = vld [vmem:[#allocation2 + $0xb8] sm:$0xff]
    %v90 = vld [vmem:[#allocation2 + $0xc0] sm:$0xff]
    %v91 = vld [vmem:[#allocation2 + $0xc8] sm:$0xff]
    %v92 = vld [vmem:[#allocation2 + $0xd0] sm:$0xff]
    %v93 = vld [vmem:[#allocation2 + $0xd8] sm:$0xff]
    %v94 = vld [vmem:[#allocation2 + $0xe0] sm:$0xff]
    %v95 = vld [vmem:[#allocation2 + $0xe8] sm:$0xff]
    %v96 = vld [vmem:[#allocation2 + $0xf0] sm:$0xff]
    %v97 = vld [vmem:[#allocation2 + $0xf8] sm:$0xff]
    %v98 = vld [vmem:[#allocation2 + $0x100] sm:$0xff]
    %v99 = vld [vmem:[#allocation2 + $0x108] sm:$0xff]
    %v100 = vld [vmem:[#allocation2 + $0x110] sm:$0xff]
    %v101 = vld [vmem:[#allocation2 + $0x118] sm:$0xff]
    %v102 = vld [vmem:[#allocation2 + $0x120] sm:$0xff]
    %v103 = vld [vmem:[#allocation2 + $0x128] sm:$0xff]
    %v104 = vld [vmem:[#allocation2 + $0x130] sm:$0xff]
    %v105 = vld [vmem:[#allocation2 + $0x138] sm:$0xff]
    %v106 = vld [vmem:[#allocation2 + $0x140] sm:$0xff]
    %v107 = vld [vmem:[#allocation2 + $0x148] sm:$0xff]
    %v108 = vld [vmem:[#allocation2 + $0x150] sm:$0xff]
    %v109 = vld [vmem:[#allocation2 + $0x158] sm:$0xff]
    %v110 = vld [vmem:[#allocation2 + $0x160] sm:$0xff]
    %v111 = vld [vmem:[#allocation2 + $0x168] sm:$0xff]
    %v112 = vld [vmem:[#allocation2 + $0x170] sm:$0xff]
    %v113 = vld [vmem:[#allocation2 + $0x178] sm:$0xff]
    %v114 = vld [vmem:[#allocation2 + $0x180] sm:$0xff]
    %v115 = vld [vmem:[#allocation2 + $0x188] sm:$0xff]
    %v116 = vld [vmem:[#allocation2 + $0x190] sm:$0xff]
    %v117 = vld [vmem:[#allocation2 + $0x198] sm:$0xff]
    %v118 = vld [vmem:[#allocation2 + $0x1a0] sm:$0xff]
    %v119 = vld [vmem:[#allocation2 + $0x1a8] sm:$0xff]
    %v120 = vld [vmem:[#allocation2 + $0x1b0] sm:$0xff]
    %v121 = vld [vmem:[#allocation2 + $0x1b8] sm:$0xff]
    %v122 = vld [vmem:[#allocation2 + $0x1c0] sm:$0xff]
    %v123 = vld [vmem:[#allocation2 + $0x1c8] sm:$0xff]
    %v124 = vld [vmem:[#allocation2 + $0x1d0] sm:$0xff]
    %v125 = vld [vmem:[#allocation2 + $0x1d8] sm:$0xff]
    %v126 = vld [vmem:[#allocation2 + $0x1e0] sm:$0xff]
    %v127 = vld [vmem:[#allocation2 + $0x1e8] sm:$0xff]
    %v128 = vld [vmem:[#allocation2 + $0x1f0] sm:$0xff]
    %v129 = vld [vmem:[#allocation2 + $0x1f8] sm:$0xff]
    %v130 = vld [vmem:[#allocation2 + $0x200] sm:$0xff]
    %v131 = vld [vmem:[#allocation2 + $0x208] sm:$0xff]
    %v132 = vld [vmem:[#allocation2 + $0x210] sm:$0xff]
    %v133 = vld [vmem:[#allocation2 + $0x218] sm:$0xff]
    %v134 = vld [vmem:[#allocation2 + $0x220] sm:$0xff]
    %v135 = vld [vmem:[#allocation2 + $0x228] sm:$0xff]
    %v136 = vld [vmem:[#allocation2 + $0x230] sm:$0xff]
    %v137 = vld [vmem:[#allocation2 + $0x238] sm:$0xff]
    %v138 = vld [vmem:[#allocation2 + $0x240] sm:$0xff]
    %v139 = vld [vmem:[#allocation2 + $0x248] sm:$0xff]
    %v140 = vld [vmem:[#allocation2 + $0x250] sm:$0xff]
    %v141 = vld [vmem:[#allocation2 + $0x258] sm:$0xff]
    %v142 = vld [vmem:[#allocation2 + $0x260] sm:$0xff]
    %v143 = vld [vmem:[#allocation2 + $0x268] sm:$0xff]
    %v144 = vld [vmem:[#allocation2 + $0x270] sm:$0xff]
    %v145 = vld [vmem:[#allocation2 + $0x278] sm:$0xff]
    %v146 = vld [vmem:[#allocation2 + $0x280] sm:$0xff]
    %v147 = vld [vmem:[#allocation2 + $0x288] sm:$0xff]
    %v148 = vld [vmem:[#allocation2 + $0x290] sm:$0xff]
    %v149 = vld [vmem:[#allocation2 + $0x298] sm:$0xff]
    %v150 = vld [vmem:[#allocation2 + $0x2a0] sm:$0xff]
    %v151 = vld [vmem:[#allocation2 + $0x2a8] sm:$0xff]
    %v152 = vld [vmem:[#allocation2 + $0x2b0] sm:$0xff]
    %v153 = vld [vmem:[#allocation2 + $0x2b8] sm:$0xff]
    %v154 = vld [vmem:[#allocation2 + $0x2c0] sm:$0xff]
    %v155 = vld [vmem:[#allocation2 + $0x2c8] sm:$0xff]
    %v156 = vld [vmem:[#allocation2 + $0x2d0] sm:$0xff]
    %v157 = vld [vmem:[#allocation2 + $0x2d8] sm:$0xff]
    %v158 = vld [vmem:[#allocation2 + $0x2e0] sm:$0xff]
    %v159 = vld [vmem:[#allocation2 + $0x2e8] sm:$0xff]
    %v160 = vld [vmem:[#allocation2 + $0x2f0] sm:$0xff]
    %v161 = vld [vmem:[#allocation2 + $0x2f8] sm:$0xff]
    %v162 = vld [vmem:[#allocation2 + $0x300] sm:$0xff]
    %v163 = vld [vmem:[#allocation2 + $0x308] sm:$0xff]
    %v164 = vld [vmem:[%s6] sm:$0x1]
    %v166 = vlaneseq
    %v167 = vshrl.u32 %v166, 7
    %v168 = vsub.s32 0, %v167
    %v169 = vrot.slane %v164, %v168
    %vm171 = vcmask 130048
    %v173 = vsel %vm171, %v64, 0
    %175 = vmatprep.subr.mxu0 0.0
    %176 = vmatpush1.msra.mxu0 %v66
    %177 = vmatprep.subr.mxu0 0.0
    %178 = vmatpush1.msra.mxu0 %v67
    %179 = vmatprep.subr.mxu0 0.0
    %180 = vmatpush1.msra.mxu0 %v68
    %181 = vmatprep.subr.mxu0 0.0
    %182 = vmatpush1.msra.mxu0 %v69
    %183 = vmatprep.subr.mxu0 0.0
    %184 = vmatpush1.msra.mxu0 %v70
    %185 = vmatprep.subr.mxu0 0.0
    %186 = vmatpush1.msra.mxu0 %v71
    %187 = vmatprep.subr.mxu0 0.0
    %188 = vmatpush1.msra.mxu0 %v72
    %189 = vmatprep.subr.mxu0 0.0
    %190 = vmatpush1.msra.mxu0 %v73
    %191 = vmatprep.subr.mxu0 0.0
    %192 = vmatpush1.msra.mxu0 %v74
    %193 = vmatprep.subr.mxu0 0.0
    %194 = vmatpush1.msra.mxu0 %v75
    %195 = vmatprep.subr.mxu0 0.0
    %196 = vmatpush1.msra.mxu0 %v76
    %197 = vmatprep.subr.mxu0 0.0
    %198 = vmatpush1.msra.mxu0 %v77
    %199 = vmatprep.subr.mxu0 0.0
    %200 = vmatpush1.msra.mxu0 %v78
    %201 = vmatprep.subr.mxu0 0.0
    %202 = vmatpush1.msra.mxu0 %v79
    %203 = vmatprep.subr.mxu0 0.0
    %204 = vmatpush1.msra.mxu0 %v80
    %205 = vmatprep.subr.mxu0 0.0
    %206 = vmatpush1.msra.mxu0 %v81
    %207 = vmatprep.subr.mxu0 0.0
    %208 = vmatpush1.msra.mxu0 %v82
    %209 = vmatprep.subr.mxu0 0.0
    %210 = vmatpush1.msra.mxu0 %v83
    %211 = vmatprep.subr.mxu0 0.0
    %212 = vmatpush1.msra.mxu0 %v84
    %213 = vmatprep.subr.mxu0 0.0
    %214 = vmatpush1.msra.mxu0 %v85
    %215 = vmatprep.subr.mxu0 0.0
    %216 = vmatpush1.msra.mxu0 %v86
    %217 = vmatprep.subr.mxu0 0.0
    %218 = vmatpush1.msra.mxu0 %v87
    %219 = vmatprep.subr.mxu0 0.0
    %220 = vmatpush1.msra.mxu0 %v88
    %221 = vmatprep.subr.mxu0 0.0
    %222 = vmatpush1.msra.mxu0 %v89
    %223 = vmatprep.subr.mxu0 0.0
    %224 = vmatpush1.msra.mxu0 %v90
    %225 = vmatprep.subr.mxu0 0.0
    %226 = vmatpush1.msra.mxu0 %v91
    %227 = vmatprep.subr.mxu0 0.0
    %228 = vmatpush1.msra.mxu0 %v92
    %229 = vmatprep.subr.mxu0 0.0
    %230 = vmatpush1.msra.mxu0 %v93
    %231 = vmatprep.subr.mxu0 0.0
    %232 = vmatpush1.msra.mxu0 %v94
    %233 = vmatprep.subr.mxu0 0.0
    %234 = vmatpush1.msra.mxu0 %v95
    %235 = vmatprep.subr.mxu0 0.0
    %236 = vmatpush1.msra.mxu0 %v96
    %237 = vmatprep.subr.mxu0 0.0
    %238 = vmatpush1.msra.mxu0 %v97
    %239 = vmatprep.mubr.f32.mxu0 %v59
    %240 = vmatmul.mubr.f32.gmra.mrb[0].mxu0 %v58
    %v241 = vpop.f32.mrb[0].mxu0
    %v242 = vadd.f32 %v169, %v241
    %v243 = vpop.f32.mrb[0].mxu0
    %244 = vdwg.mxu0
    %245 = vmatprep.subr.mxu0 0.0
    %246 = vmatpush1.msra.mxu0 %v98
    %247 = vmatprep.subr.mxu0 0.0
    %248 = vmatpush1.msra.mxu0 %v99
    %249 = vmatprep.subr.mxu0 0.0
    %250 = vmatpush1.msra.mxu0 %v100
    %251 = vmatprep.subr.mxu0 0.0
    %252 = vmatpush1.msra.mxu0 %v101
    %253 = vmatprep.subr.mxu0 0.0
    %254 = vmatpush1.msra.mxu0 %v102
    %255 = vmatprep.subr.mxu0 0.0
    %256 = vmatpush1.msra.mxu0 %v103
    %257 = vmatprep.subr.mxu0 0.0
    %258 = vmatpush1.msra.mxu0 %v104
    %259 = vmatprep.subr.mxu0 0.0
    %260 = vmatpush1.msra.mxu0 %v105
    %261 = vmatprep.subr.mxu0 0.0
    %262 = vmatpush1.msra.mxu0 %v106
    %263 = vmatprep.subr.mxu0 0.0
    %264 = vmatpush1.msra.mxu0 %v107
    %265 = vmatprep.subr.mxu0 0.0
    %266 = vmatpush1.msra.mxu0 %v108
    %267 = vmatprep.subr.mxu0 0.0
    %268 = vmatpush1.msra.mxu0 %v109
    %269 = vmatprep.subr.mxu0 0.0
    %270 = vmatpush1.msra.mxu0 %v110
    %271 = vmatprep.subr.mxu0 0.0
    %272 = vmatpush1.msra.mxu0 %v111
    %273 = vmatprep.subr.mxu0 0.0
    %274 = vmatpush1.msra.mxu0 %v112
    %275 = vmatprep.subr.mxu0 0.0
    %276 = vmatpush1.msra.mxu0 %v113
    %277 = vmatprep.subr.mxu0 0.0
    %278 = vmatpush1.msra.mxu0 %v114
    %279 = vmatprep.subr.mxu0 0.0
    %280 = vmatpush1.msra.mxu0 %v115
    %281 = vmatprep.subr.mxu0 0.0
    %282 = vmatpush1.msra.mxu0 %v116
    %283 = vmatprep.subr.mxu0 0.0
    %284 = vmatpush1.msra.mxu0 %v117
    %285 = vmatprep.subr.mxu0 0.0
    %286 = vmatpush1.msra.mxu0 %v118
    %287 = vmatprep.subr.mxu0 0.0
    %288 = vmatpush1.msra.mxu0 %v119
    %289 = vmatprep.subr.mxu0 0.0
    %290 = vmatpush1.msra.mxu0 %v120
    %291 = vmatprep.subr.mxu0 0.0
    %292 = vmatpush1.msra.mxu0 %v121
    %293 = vmatprep.subr.mxu0 0.0
    %294 = vmatpush1.msra.mxu0 %v122
    %295 = vmatprep.subr.mxu0 0.0
    %296 = vmatpush1.msra.mxu0 %v123
    %297 = vmatprep.subr.mxu0 0.0
    %298 = vmatpush1.msra.mxu0 %v124
    %299 = vmatprep.subr.mxu0 0.0
    %300 = vmatpush1.msra.mxu0 %v125
    %301 = vmatprep.subr.mxu0 0.0
    %302 = vmatpush1.msra.mxu0 %v126
    %303 = vmatprep.subr.mxu0 0.0
    %304 = vmatpush1.msra.mxu0 %v127
    %305 = vmatprep.subr.mxu0 0.0
    %306 = vmatpush1.msra.mxu0 %v128
    %307 = vmatprep.subr.mxu0 0.0
    %308 = vmatpush1.msra.mxu0 %v129
    %309 = vmatprep.mubr.f32.mxu0 %v61
    %310 = vmatmul.mubr.f32.gmra.mrb[0].mxu0 %v60
    %v311 = vpop.f32.mrb[0].mxu0
    %v312 = vadd.f32 %v242, %v311
    %v313 = vpop.f32.mrb[0].mxu0
    %314 = vdwg.mxu0
    %315 = vmatprep.subr.mxu0 0.0
    %316 = vmatpush1.msra.mxu0 %v130
    %317 = vmatprep.subr.mxu0 0.0
    %318 = vmatpush1.msra.mxu0 %v131
    %319 = vmatprep.subr.mxu0 0.0
    %320 = vmatpush1.msra.mxu0 %v132
    %321 = vmatprep.subr.mxu0 0.0
    %322 = vmatpush1.msra.mxu0 %v133
    %323 = vmatprep.subr.mxu0 0.0
    %324 = vmatpush1.msra.mxu0 %v134
    %325 = vmatprep.subr.mxu0 0.0
    %326 = vmatpush1.msra.mxu0 %v135
    %327 = vmatprep.subr.mxu0 0.0
    %328 = vmatpush1.msra.mxu0 %v136
    %329 = vmatprep.subr.mxu0 0.0
    %330 = vmatpush1.msra.mxu0 %v137
    %331 = vmatprep.subr.mxu0 0.0
    %332 = vmatpush1.msra.mxu0 %v138
    %333 = vmatprep.subr.mxu0 0.0
    %334 = vmatpush1.msra.mxu0 %v139
    %335 = vmatprep.subr.mxu0 0.0
    %336 = vmatpush1.msra.mxu0 %v140
    %337 = vmatprep.subr.mxu0 0.0
    %338 = vmatpush1.msra.mxu0 %v141
    %339 = vmatprep.subr.mxu0 0.0
    %340 = vmatpush1.msra.mxu0 %v142
    %341 = vmatprep.subr.mxu0 0.0
    %342 = vmatpush1.msra.mxu0 %v143
    %343 = vmatprep.subr.mxu0 0.0
    %344 = vmatpush1.msra.mxu0 %v144
    %345 = vmatprep.subr.mxu0 0.0
    %346 = vmatpush1.msra.mxu0 %v145
    %347 = vmatprep.subr.mxu0 0.0
    %348 = vmatpush1.msra.mxu0 %v146
    %349 = vmatprep.subr.mxu0 0.0
    %350 = vmatpush1.msra.mxu0 %v147
    %351 = vmatprep.subr.mxu0 0.0
    %352 = vmatpush1.msra.mxu0 %v148
    %353 = vmatprep.subr.mxu0 0.0
    %354 = vmatpush1.msra.mxu0 %v149
    %355 = vmatprep.subr.mxu0 0.0
    %356 = vmatpush1.msra.mxu0 %v150
    %357 = vmatprep.subr.mxu0 0.0
    %358 = vmatpush1.msra.mxu0 %v151
    %359 = vmatprep.subr.mxu0 0.0
    %360 = vmatpush1.msra.mxu0 %v152
    %361 = vmatprep.subr.mxu0 0.0
    %362 = vmatpush1.msra.mxu0 %v153
    %363 = vmatprep.subr.mxu0 0.0
    %364 = vmatpush1.msra.mxu0 %v154
    %365 = vmatprep.subr.mxu0 0.0
    %366 = vmatpush1.msra.mxu0 %v155
    %367 = vmatprep.subr.mxu0 0.0
    %368 = vmatpush1.msra.mxu0 %v156
    %369 = vmatprep.subr.mxu0 0.0
    %370 = vmatpush1.msra.mxu0 %v157
    %371 = vmatprep.subr.mxu0 0.0
    %372 = vmatpush1.msra.mxu0 %v158
    %373 = vmatprep.subr.mxu0 0.0
    %374 = vmatpush1.msra.mxu0 %v159
    %375 = vmatprep.subr.mxu0 0.0
    %376 = vmatpush1.msra.mxu0 %v160
    %377 = vmatprep.subr.mxu0 0.0
    %378 = vmatpush1.msra.mxu0 %v161
    %379 = vmatprep.mubr.f32.mxu0 %v63
    %380 = vmatmul.mubr.f32.gmra.mrb[0].mxu0 %v62
    %v381 = vpop.f32.mrb[0].mxu0
    %v382 = vadd.f32 %v312, %v381
    %v383 = vpop.f32.mrb[0].mxu0
    %384 = vdwg.mxu0
    %385 = vmatprep.subr.mxu0 0.0
    %386 = vmatpush1.msra.mxu0 %v162
    %387 = vmatprep.subr.mxu0 0.0
    %388 = vmatpush1.msra.mxu0 %v163
    %389 = vmatprep.subr.mxu0 0.0
    %390 = vmatpush1.msra.mxu0 0.0
    %391 = vmatprep.subr.mxu0 0.0
    %392 = vmatpush1.msra.mxu0 0.0
    %393 = vmatprep.subr.mxu0 0.0
    %394 = vmatpush1.msra.mxu0 0.0
    %395 = vmatprep.subr.mxu0 0.0
    %396 = vmatpush1.msra.mxu0 0.0
    %397 = vmatprep.subr.mxu0 0.0
    %398 = vmatpush1.msra.mxu0 0.0
    %399 = vmatprep.subr.mxu0 0.0
    %400 = vmatpush1.msra.mxu0 0.0
    %401 = vmatprep.subr.mxu0 0.0
    %402 = vmatpush1.msra.mxu0 0.0
    %403 = vmatprep.subr.mxu0 0.0
    %404 = vmatpush1.msra.mxu0 0.0
    %405 = vmatprep.subr.mxu0 0.0
    %406 = vmatpush1.msra.mxu0 0.0
    %407 = vmatprep.subr.mxu0 0.0
    %408 = vmatpush1.msra.mxu0 0.0
    %409 = vmatprep.subr.mxu0 0.0
    %410 = vmatpush1.msra.mxu0 0.0
    %411 = vmatprep.subr.mxu0 0.0
    %412 = vmatpush1.msra.mxu0 0.0
    %413 = vmatprep.subr.mxu0 0.0
    %414 = vmatpush1.msra.mxu0 0.0
    %415 = vmatprep.subr.mxu0 0.0
    %416 = vmatpush1.msra.mxu0 0.0
    %417 = vmatprep.subr.mxu0 0.0
    %418 = vmatpush1.msra.mxu0 0.0
    %419 = vmatprep.subr.mxu0 0.0
    %420 = vmatpush1.msra.mxu0 0.0
    %421 = vmatprep.subr.mxu0 0.0
    %422 = vmatpush1.msra.mxu0 0.0
    %423 = vmatprep.subr.mxu0 0.0
    %424 = vmatpush1.msra.mxu0 0.0
    %425 = vmatprep.subr.mxu0 0.0
    %426 = vmatpush1.msra.mxu0 0.0
    %427 = vmatprep.subr.mxu0 0.0
    %428 = vmatpush1.msra.mxu0 0.0
    %429 = vmatprep.subr.mxu0 0.0
    %430 = vmatpush1.msra.mxu0 0.0
    %431 = vmatprep.subr.mxu0 0.0
    %432 = vmatpush1.msra.mxu0 0.0
    %433 = vmatprep.subr.mxu0 0.0
    %434 = vmatpush1.msra.mxu0 0.0
    %435 = vmatprep.subr.mxu0 0.0
    %436 = vmatpush1.msra.mxu0 0.0
    %437 = vmatprep.subr.mxu0 0.0
    %438 = vmatpush1.msra.mxu0 0.0
    %439 = vmatprep.subr.mxu0 0.0
    %440 = vmatpush1.msra.mxu0 0.0
    %441 = vmatprep.subr.mxu0 0.0
    %442 = vmatpush1.msra.mxu0 0.0
    %443 = vmatprep.subr.mxu0 0.0
    %444 = vmatpush1.msra.mxu0 0.0
    %445 = vmatprep.subr.mxu0 0.0
    %446 = vmatpush1.msra.mxu0 0.0
    %447 = vmatprep.subr.mxu0 0.0
    %448 = vmatpush1.msra.mxu0 0.0
    %449 = vmatprep.mubr.f32.mxu0 0.0
    %450 = vmatmul.mubr.f32.gmra.mrb[0].mxu0 %v173
    %v451 = vpop.f32.mrb[0].mxu0
    %v452 = vadd.f32 %v382, %v451
    %v453 = vpop.f32.mrb[0].mxu0
    %454 = vdwg.mxu0
    %v455 = vld [vmem:[%s5] sm:$0x7]
    %457 = vset.pattern.permute.xlu0 0
    %458 = vperm.xlu0 %457, %v65
    %v459 = vpop.permute.xlu0 %458
    %v461 = vlaneseq
    %v462 = vshrl.u32 %v461, 7
    %v463 = vsub.s32 0, %v462
    %v464 = vrot.slane %v455, %v463
    %v465 = vmul.f32 %v459, %v464
    %v466 = vadd.f32 %v452, %v465
    %467 = vset.pattern.permute.xlu0 1
    %468 = vperm.xlu0 %467, %v65
    %v469 = vpop.permute.xlu0 %468
    %v471 = vlaneseq
    %v472 = vshrl.u32 %v471, 7
    %v473 = vsub.s32 1, %v472
    %v474 = vrot.slane %v455, %v473
    %v475 = vmul.f32 %v469, %v474
    %v476 = vadd.f32 %v466, %v475
    %477 = vset.pattern.permute.xlu0 2
    %478 = vperm.xlu0 %477, %v65
    %v479 = vpop.permute.xlu0 %478
    %v481 = vlaneseq
    %v482 = vshrl.u32 %v481, 7
    %v483 = vsub.s32 2, %v482
    %v484 = vrot.slane %v455, %v483
    %v485 = vmul.f32 %v479, %v484
    %v486 = vadd.f32 %v476, %v485
    %vm487 = vcmp.ge.f32.partialorder %v486, 0.0
    %v488 = vmul.f32 %v486, 0.01
    %v489 = vsel %vm487, %v486, %v488
    %v490 = vld [vmem:[%s2] sm:$0xff]
    %v491 = vld [vmem:[%s7] sm:$0xff]
    %v492 = vld [vmem:[%s7 + $0x8] sm:$0xff]
    %v493 = vld [vmem:[%s7 + $0x10] sm:$0xff]
    %v494 = vld [vmem:[%s7 + $0x18] sm:$0xff]
    %v495 = vld [vmem:[%s7 + $0x20] sm:$0xff]
    %v496 = vld [vmem:[%s7 + $0x28] sm:$0xff]
    %v497 = vld [vmem:[%s7 + $0x30] sm:$0xff]
    %v498 = vld [vmem:[%s7 + $0x38] sm:$0xff]
    %v499 = vld [vmem:[%s7 + $0x40] sm:$0xff]
    %v500 = vld [vmem:[%s7 + $0x48] sm:$0xff]
    %v501 = vld [vmem:[%s7 + $0x50] sm:$0xff]
    %v502 = vld [vmem:[%s7 + $0x58] sm:$0xff]
    %v503 = vld [vmem:[%s7 + $0x60] sm:$0xff]
    %v504 = vld [vmem:[%s7 + $0x68] sm:$0xff]
    %v505 = vld [vmem:[%s7 + $0x70] sm:$0xff]
    %v506 = vld [vmem:[%s7 + $0x78] sm:$0xff]
    %v507 = vld [vmem:[%s9] sm:$0x1]
    %v509 = vlaneseq
    %v510 = vshrl.u32 %v509, 7
    %v511 = vsub.s32 0, %v510
    %v512 = vrot.slane %v507, %v511
    %514 = vmatprep.subr.mxu0 0.0
    %515 = vmatpush1.msra.mxu0 %v491
    %516 = vmatprep.subr.mxu0 0.0
    %517 = vmatpush1.msra.mxu0 %v492
    %518 = vmatprep.subr.mxu0 0.0
    %519 = vmatpush1.msra.mxu0 %v493
    %520 = vmatprep.subr.mxu0 0.0
    %521 = vmatpush1.msra.mxu0 %v494
    %522 = vmatprep.subr.mxu0 0.0
    %523 = vmatpush1.msra.mxu0 %v495
    %524 = vmatprep.subr.mxu0 0.0
    %525 = vmatpush1.msra.mxu0 %v496
    %526 = vmatprep.subr.mxu0 0.0
    %527 = vmatpush1.msra.mxu0 %v497
    %528 = vmatprep.subr.mxu0 0.0
    %529 = vmatpush1.msra.mxu0 %v498
    %530 = vmatprep.subr.mxu0 0.0
    %531 = vmatpush1.msra.mxu0 %v499
    %532 = vmatprep.subr.mxu0 0.0
    %533 = vmatpush1.msra.mxu0 %v500
    %534 = vmatprep.subr.mxu0 0.0
    %535 = vmatpush1.msra.mxu0 %v501
    %536 = vmatprep.subr.mxu0 0.0
    %537 = vmatpush1.msra.mxu0 %v502
    %538 = vmatprep.subr.mxu0 0.0
    %539 = vmatpush1.msra.mxu0 %v503
    %540 = vmatprep.subr.mxu0 0.0
    %541 = vmatpush1.msra.mxu0 %v504
    %542 = vmatprep.subr.mxu0 0.0
    %543 = vmatpush1.msra.mxu0 %v505
    %544 = vmatprep.subr.mxu0 0.0
    %545 = vmatpush1.msra.mxu0 %v506
    %546 = vmatprep.subr.mxu0 0.0
    %547 = vmatpush1.msra.mxu0 0.0
    %548 = vmatprep.subr.mxu0 0.0
    %549 = vmatpush1.msra.mxu0 0.0
    %550 = vmatprep.subr.mxu0 0.0
    %551 = vmatpush1.msra.mxu0 0.0
    %552 = vmatprep.subr.mxu0 0.0
    %553 = vmatpush1.msra.mxu0 0.0
    %554 = vmatprep.subr.mxu0 0.0
    %555 = vmatpush1.msra.mxu0 0.0
    %556 = vmatprep.subr.mxu0 0.0
    %557 = vmatpush1.msra.mxu0 0.0
    %558 = vmatprep.subr.mxu0 0.0
    %559 = vmatpush1.msra.mxu0 0.0
    %560 = vmatprep.subr.mxu0 0.0
    %561 = vmatpush1.msra.mxu0 0.0
    %562 = vmatprep.subr.mxu0 0.0
    %563 = vmatpush1.msra.mxu0 0.0
    %564 = vmatprep.subr.mxu0 0.0
    %565 = vmatpush1.msra.mxu0 0.0
    %566 = vmatprep.subr.mxu0 0.0
    %567 = vmatpush1.msra.mxu0 0.0
    %568 = vmatprep.subr.mxu0 0.0
    %569 = vmatpush1.msra.mxu0 0.0
    %570 = vmatprep.subr.mxu0 0.0
    %571 = vmatpush1.msra.mxu0 0.0
    %572 = vmatprep.subr.mxu0 0.0
    %573 = vmatpush1.msra.mxu0 0.0
    %574 = vmatprep.subr.mxu0 0.0
    %575 = vmatpush1.msra.mxu0 0.0
    %576 = vmatprep.subr.mxu0 0.0
    %577 = vmatpush1.msra.mxu0 0.0
    %578 = vmatprep.mubr.f32.mxu0 0.0
    %579 = vmatmul.mubr.f32.gmra.mrb[0].mxu0 %v489
    %v580 = vpop.f32.mrb[0].mxu0
    %v581 = vadd.f32 %v512, %v580
    %v582 = vpop.f32.mrb[0].mxu0
    %583 = vdwg.mxu0
    %v584 = vld [vmem:[%s8] sm:$0x7]
    %586 = vset.pattern.permute.xlu0 0
    %587 = vperm.xlu0 %586, %v490
    %v588 = vpop.permute.xlu0 %587
    %v590 = vlaneseq
    %v591 = vshrl.u32 %v590, 7
    %v592 = vsub.s32 0, %v591
    %v593 = vrot.slane %v584, %v592
    %v594 = vmul.f32 %v588, %v593
    %v595 = vadd.f32 %v581, %v594
    %596 = vset.pattern.permute.xlu0 1
    %597 = vperm.xlu0 %596, %v490
    %v598 = vpop.permute.xlu0 %597
    %v600 = vlaneseq
    %v601 = vshrl.u32 %v600, 7
    %v602 = vsub.s32 1, %v601
    %v603 = vrot.slane %v584, %v602
    %v604 = vmul.f32 %v598, %v603
    %v605 = vadd.f32 %v595, %v604
    %606 = vset.pattern.permute.xlu0 2
    %607 = vperm.xlu0 %606, %v490
    %v608 = vpop.permute.xlu0 %607
    %v610 = vlaneseq
    %v611 = vshrl.u32 %v610, 7
    %v612 = vsub.s32 2, %v611
    %v613 = vrot.slane %v584, %v612
    %v614 = vmul.f32 %v608, %v613
    %v615 = vadd.f32 %v605, %v614
    %vm616 = vcmp.ge.f32.partialorder %v615, 0.0
    %v617 = vmul.f32 %v615, 0.01
    %v618 = vsel %vm616, %v615, %v617
    %v619 = vld [vmem:[%s3] sm:$0xff]
    %v620 = vld [vmem:[%s10] sm:$0xff]
    %v621 = vld [vmem:[%s10 + $0x8] sm:$0xff]
    %v622 = vld [vmem:[%s10 + $0x10] sm:$0xff]
    %v623 = vld [vmem:[%s10 + $0x18] sm:$0xff]
    %v624 = vld [vmem:[%s10 + $0x20] sm:$0xff]
    %v625 = vld [vmem:[%s10 + $0x28] sm:$0xff]
    %v626 = vld [vmem:[%s10 + $0x30] sm:$0xff]
    %v627 = vld [vmem:[%s10 + $0x38] sm:$0xff]
    %v628 = vld [vmem:[%s12] sm:$0x1]
    %v630 = vlaneseq
    %v631 = vshrl.u32 %v630, 7
    %v632 = vsub.s32 0, %v631
    %v633 = vrot.slane %v628, %v632
    %vm635 = vcmask 523264
    %v637 = vsel %vm635, %v618, 0
    %639 = vmatprep.subr.mxu0 0.0
    %640 = vmatpush1.msra.mxu0 %v620
    %641 = vmatprep.subr.mxu0 0.0
    %642 = vmatpush1.msra.mxu0 %v621
    %643 = vmatprep.subr.mxu0 0.0
    %644 = vmatpush1.msra.mxu0 %v622
    %645 = vmatprep.subr.mxu0 0.0
    %646 = vmatpush1.msra.mxu0 %v623
    %647 = vmatprep.subr.mxu0 0.0
    %648 = vmatpush1.msra.mxu0 %v624
    %649 = vmatprep.subr.mxu0 0.0
    %650 = vmatpush1.msra.mxu0 %v625
    %651 = vmatprep.subr.mxu0 0.0
    %652 = vmatpush1.msra.mxu0 %v626
    %653 = vmatprep.subr.mxu0 0.0
    %654 = vmatpush1.msra.mxu0 %v627
    %655 = vmatprep.subr.mxu0 0.0
    %656 = vmatpush1.msra.mxu0 0.0
    %657 = vmatprep.subr.mxu0 0.0
    %658 = vmatpush1.msra.mxu0 0.0
    %659 = vmatprep.subr.mxu0 0.0
    %660 = vmatpush1.msra.mxu0 0.0
    %661 = vmatprep.subr.mxu0 0.0
    %662 = vmatpush1.msra.mxu0 0.0
    %663 = vmatprep.subr.mxu0 0.0
    %664 = vmatpush1.msra.mxu0 0.0
    %665 = vmatprep.subr.mxu0 0.0
    %666 = vmatpush1.msra.mxu0 0.0
    %667 = vmatprep.subr.mxu0 0.0
    %668 = vmatpush1.msra.mxu0 0.0
    %669 = vmatprep.subr.mxu0 0.0
    %670 = vmatpush1.msra.mxu0 0.0
    %671 = vmatprep.subr.mxu0 0.0
    %672 = vmatpush1.msra.mxu0 0.0
    %673 = vmatprep.subr.mxu0 0.0
    %674 = vmatpush1.msra.mxu0 0.0
    %675 = vmatprep.subr.mxu0 0.0
    %676 = vmatpush1.msra.mxu0 0.0
    %677 = vmatprep.subr.mxu0 0.0
    %678 = vmatpush1.msra.mxu0 0.0
    %679 = vmatprep.subr.mxu0 0.0
    %680 = vmatpush1.msra.mxu0 0.0
    %681 = vmatprep.subr.mxu0 0.0
    %682 = vmatpush1.msra.mxu0 0.0
    %683 = vmatprep.subr.mxu0 0.0
    %684 = vmatpush1.msra.mxu0 0.0
    %685 = vmatprep.subr.mxu0 0.0
    %686 = vmatpush1.msra.mxu0 0.0
    %687 = vmatprep.subr.mxu0 0.0
    %688 = vmatpush1.msra.mxu0 0.0
    %689 = vmatprep.subr.mxu0 0.0
    %690 = vmatpush1.msra.mxu0 0.0
    %691 = vmatprep.subr.mxu0 0.0
    %692 = vmatpush1.msra.mxu0 0.0
    %693 = vmatprep.subr.mxu0 0.0
    %694 = vmatpush1.msra.mxu0 0.0
    %695 = vmatprep.subr.mxu0 0.0
    %696 = vmatpush1.msra.mxu0 0.0
    %697 = vmatprep.subr.mxu0 0.0
    %698 = vmatpush1.msra.mxu0 0.0
    %699 = vmatprep.subr.mxu0 0.0
    %700 = vmatpush1.msra.mxu0 0.0
    %701 = vmatprep.subr.mxu0 0.0
    %702 = vmatpush1.msra.mxu0 0.0
    %703 = vmatprep.mubr.f32.mxu0 0.0
    %704 = vmatmul.mubr.f32.gmra.mrb[0].mxu0 %v637
    %v705 = vpop.f32.mrb[0].mxu0
    %v706 = vadd.f32 %v633, %v705
    %v707 = vpop.f32.mrb[0].mxu0
    %708 = vdwg.mxu0
    %v709 = vld [vmem:[%s11] sm:$0x7]
    %711 = vset.pattern.permute.xlu0 0
    %712 = vperm.xlu0 %711, %v619
    %v713 = vpop.permute.xlu0 %712
    %v715 = vlaneseq
    %v716 = vshrl.u32 %v715, 7
    %v717 = vsub.s32 0, %v716
    %v718 = vrot.slane %v709, %v717
    %v719 = vmul.f32 %v713, %v718
    %v720 = vadd.f32 %v706, %v719
    %721 = vset.pattern.permute.xlu0 1
    %722 = vperm.xlu0 %721, %v619
    %v723 = vpop.permute.xlu0 %722
    %v725 = vlaneseq
    %v726 = vshrl.u32 %v725, 7
    %v727 = vsub.s32 1, %v726
    %v728 = vrot.slane %v709, %v727
    %v729 = vmul.f32 %v723, %v728
    %v730 = vadd.f32 %v720, %v729
    %731 = vset.pattern.permute.xlu0 2
    %732 = vperm.xlu0 %731, %v619
    %v733 = vpop.permute.xlu0 %732
    %v735 = vlaneseq
    %v736 = vshrl.u32 %v735, 7
    %v737 = vsub.s32 2, %v736
    %v738 = vrot.slane %v709, %v737
    %v739 = vmul.f32 %v733, %v738
    %v740 = vadd.f32 %v730, %v739
    %741 = vst [vmem:[%s13] sm:$0xff] %v740
    // Predicated region
    $region58: #{_forward_noisy.1} parent=1 // pred_check
      _
    $region59: #{_forward_noisy.1} parent=1 // pred_check_branch
      %743 = sbr.rel (0) target = $region61
    $region60: #{_forward_noisy.1} parent=1 // pred_region
      _
    $region61: #{_forward_noisy.1} parent=1 // pred_fallthru
      _
    // Predicated region
    $region62: #{_forward_noisy.1} parent=1 // pred_check
      _
    $region63: #{_forward_noisy.1} parent=1 // pred_check_branch
      %745 = sbr.rel (0) target = $region65
    $region64: #{_forward_noisy.1} parent=1 // pred_region
      _
    $region65: #{_forward_noisy.1} parent=1 // pred_fallthru
      _
    %746 = vsyncpa [#allocation3], 1

</llo_original>
